<compile_context>
chip_gen: v7x
topology: tpu7x:2x2x1
jax: 0.10.0
libtpu: 0.0.40
codegen_flags: <defaults>
</compile_context>

<pallas_src>
import jax
import jax.numpy as jnp
from jax.experimental import pallas as pl
from jax.experimental.pallas import tpu as pltpu


def _last_step_kernel(h_ref, o_ref):
    # h_ref: (D, TB, H)  last layer, all directions, one batch tile
    # o_ref: (TB, D*H)   lane-dense output slab for the same batch tile
    D, _, H = h_ref.shape
    for d in range(D):  # static Python loop, D is 1 or 2
        o_ref[:, d * H:(d + 1) * H] = h_ref[d]


def _vmem_capacity_bytes():
    try:
        return int(pltpu.get_tpu_info().vmem_capacity_bytes)
    except Exception:
        return 64 * 1024 * 1024  # conservative fallback: v7x per-TC VMEM


def _pick_batch_tile(B, max_tb, pack, min_tiles):
    """Largest tb that divides B, is a sublane-pack multiple (or == B),
    fits max_tb, and yields at least `min_tiles` grid steps."""
    max_tb = max(1, min(max_tb, B))
    for tb in range(max_tb, 0, -1):
        if B % tb != 0:
            continue
        if tb != B and tb % pack != 0:
            continue
        if pl.cdiv(B, tb) < min_tiles:
            continue
        return tb
    # Fallback: largest pack multiple <= max_tb (masked partial last tile).
    tb = max(pack, (max_tb // pack) * pack)
    return min(tb, B)


def last_time_step(rnn_input, rnn_layers=1, bidirectional=False,
                   batch_tile=None, xla_fallback_bytes=1 << 20):
    """JAX/Pallas equivalent of LastTimeStep.forward.

    rnn_input: tuple (rnn_output, last_step) where last_step is either h_n of
               shape (rnn_layers*num_directions, batch, hidden) or a tuple
               (h_n, c_n) as produced by an LSTM.
    """
    _rnn_output = rnn_input[0]  # unused, mirrors the PyTorch module
    last_step = rnn_input[1]
    if isinstance(last_step, tuple):
        last_step = last_step[0]

    num_directions = 2 if bidirectional else 1
    LD, B, H = last_step.shape
    assert LD == rnn_layers * num_directions, "h_n leading dim mismatch"

    # D == 1: result is exactly h_n[-1]; a plain XLA slice beats a Pallas
    # custom-call launch + redundant HBM round trip.
    if num_directions == 1:
        return last_step[LD - 1]

    itemsize = jnp.dtype(last_step.dtype).itemsize
    slab_bytes = num_directions * B * H * itemsize  # last layer's data

    # Tiny slabs (typical RNN h_n) or non-lane-aligned hidden sizes: a fused
    # XLA concat (one contiguous read per direction, one contiguous write) is
    # as fast or faster than a kernel launch and avoids masked stores.
    if slab_bytes <= xla_fallback_bytes or (H % 128) != 0:
        rows = [last_step[LD - num_directions + d] for d in range(num_directions)]
        return jnp.concatenate(rows, axis=-1)

    pack = max(8, 32 // itemsize)  # sublane packing: 8 f32, 16 bf16, 32 int8

    # --- VMEM / tile sizing -------------------------------------------------
    # Default pipeline allocates 2 input + 2 output buffers per tile:
    #   footprint = 2 * (in_tile + out_tile) = 4 * D * tb * H * itemsize
    # Budget ~<=48 MiB and <=70% of physical VMEM (64 MiB on v7x).
    vmem_cap = _vmem_capacity_bytes()
    vmem_budget = min(48 << 20, (vmem_cap * 7) // 10)
    max_tb = max(1, vmem_budget // (4 * num_directions * H * itemsize))

    # Multi-MiB slabs: ask for >=2 grid steps so v7x's two TensorCores can
    # both issue DMAs (one extra ~0.35us step elsewhere is negligible).
    min_tiles = 2 if slab_bytes > (6 << 20) else 1

    if batch_tile is not None:
        tb = min(batch_tile, B)
        assert tb == B or tb % pack == 0, \
            "batch_tile must be B or a multiple of the sublane pack"
    else:
        tb = _pick_batch_tile(B, max_tb, pack, min_tiles)
    num_tiles = pl.cdiv(B, tb)

    # Input block: whole last layer (all D directions) for one batch tile.
    # Leading block size = D, so block index (rnn_layers - 1) selects rows
    # [(L-1)*D, L*D) == the last layer's direction slices.
    in_spec = pl.BlockSpec(
        (num_directions, tb, H),
        lambda b: (rnn_layers - 1, b, 0),
    )
    # Output block spans the full D*H width -> single lane-dense DMA slab.
    out_spec = pl.BlockSpec(
        (tb, num_directions * H),
        lambda b: (b, 0),
    )

    bytes_accessed = 2 * slab_bytes  # read + write
    cost = pl.CostEstimate(flops=0, transcendentals=0,
                           bytes_accessed=bytes_accessed)

    vmem_limit = int(min(vmem_cap, vmem_budget + (8 << 20)))

    return pl.pallas_call(
        _last_step_kernel,
        out_shape=jax.ShapeDtypeStruct((B, num_directions * H), last_step.dtype),
        grid_spec=pltpu.PrefetchScalarGridSpec(
            num_scalar_prefetch=0,
            grid=(num_tiles,),
            in_specs=[in_spec],
            out_specs=out_spec,
        ),
        compiler_params=pltpu.CompilerParams(
            dimension_semantics=("parallel",),  # batch tiles are independent
            vmem_limit_bytes=vmem_limit,
        ),
        cost_estimate=cost,
    )(last_step)


def _ref(h_n, rnn_layers, num_directions):
    B = h_n.shape[1]
    r = h_n.reshape(rnn_layers, num_directions, B, -1)[rnn_layers - 1]
    return jnp.transpose(r, (1, 0, 2)).reshape(B, -1)


if __name__ == "__main__":
    key = jax.random.PRNGKey(0)
    k1, k2, k3, k4, k5 = jax.random.split(key, 5)

    # --- Test 1: bidirectional, 2 layers; force the Pallas path (threshold=0)
    rnn_layers, D = 2, 2
    B, S, H = 16, 8, 256
    rnn_output = jax.random.normal(k1, (B, S, D * H), dtype=jnp.float32)
    h_n = jax.random.normal(k2, (rnn_layers * D, B, H), dtype=jnp.float32)
    out = last_time_step((rnn_output, h_n), rnn_layers=rnn_layers,
                         bidirectional=True, xla_fallback_bytes=0)
    out = jax.block_until_ready(out)
    ref = _ref(h_n, rnn_layers, D)
    assert out.shape == (B, D * H) and out.dtype == h_n.dtype
    assert jnp.allclose(out, ref), "mismatch vs reference (test 1)"

    # --- Test 2: unidirectional LSTM-style (h_n, c_n) tuple -> fast slice path
    rnn_layers1, B1, H1 = 3, 8, 128
    h_n1 = jax.random.normal(k3, (rnn_layers1, B1, H1), dtype=jnp.float32)
    c_n1 = jnp.zeros_like(h_n1)
    out1 = last_time_step((rnn_output, (h_n1, c_n1)),
                          rnn_layers=rnn_layers1, bidirectional=False)
    out1 = jax.block_until_ready(out1)
    assert out1.shape == (B1, H1)
    assert jnp.allclose(out1, _ref(h_n1, rnn_layers1, 1)), "mismatch (test 2)"

    # --- Test 3: bidirectional, multiple batch tiles on the Pallas path
    B2 = 32
    h_n2 = jax.random.normal(k4, (rnn_layers * D, B2, H), dtype=jnp.float32)
    out2 = last_time_step((None, h_n2), rnn_layers=rnn_layers,
                          bidirectional=True, batch_tile=8, xla_fallback_bytes=0)
    out2 = jax.block_until_ready(out2)
    assert out2.shape == (B2, D * H)
    assert jnp.allclose(out2, _ref(h_n2, rnn_layers, D)), "mismatch (test 3)"

    # --- Test 4: small slab + misaligned H -> XLA concat fast path
    H3, B3 = 96, 4
    h_n3 = jax.random.normal(k5, (rnn_layers * D, B3, H3), dtype=jnp.float32)
    out3 = last_time_step((None, h_n3), rnn_layers=rnn_layers, bidirectional=True)
    out3 = jax.block_until_ready(out3)
    assert out3.shape == (B3, D * H3)
    assert jnp.allclose(out3, _ref(h_n3, rnn_layers, D)), "mismatch (test 4)"

    print("KERNEL_OK")
</pallas_src>

<mosaic_0001>
module attributes {stable_mosaic.version = 11 : i64} {
  func.func @_last_step_kernel(%arg0: i32, %arg1: memref<2x16x256xf32, #tpu.memory_space<vmem>>, %arg2: memref<16x512xf32, #tpu.memory_space<vmem>>) attributes {dimension_semantics = [#tpu.dimension_semantics<parallel>], iteration_bounds = array<i64: 1>, scalar_prefetch = 0 : i64, scratch_operands = 0 : i64, tpu.core_type = #tpu.core_type<tc>, window_params = [{transform_indices = @transform_0, window_bounds = array<i64: 2, 16, 256>}, {transform_indices = @transform_1, window_bounds = array<i64: 16, 512>}]} {
    %c0 = arith.constant 0 : index
    %c0_0 = arith.constant 0 : index
    %c0_1 = arith.constant 0 : index
    %0 = vector.load %arg1[%c0, %c0_0, %c0_1] : memref<2x16x256xf32, #tpu.memory_space<vmem>>, vector<1x16x256xf32>
    %1 = vector.shape_cast %0 : vector<1x16x256xf32> to vector<16x256xf32>
    %c0_2 = arith.constant 0 : index
    %c0_3 = arith.constant 0 : index
    %2 = vector.load %arg2[%c0_2, %c0_3] : memref<16x512xf32, #tpu.memory_space<vmem>>, vector<16x256xf32>
    tpu.vector_store %arg2[%c0_2, %c0_3], %1 {strides = array<i32>} : memref<16x512xf32, #tpu.memory_space<vmem>>, vector<16x256xf32>,
    %c1 = arith.constant 1 : index
    %c0_4 = arith.constant 0 : index
    %c0_5 = arith.constant 0 : index
    %3 = vector.load %arg1[%c1, %c0_4, %c0_5] : memref<2x16x256xf32, #tpu.memory_space<vmem>>, vector<1x16x256xf32>
    %4 = vector.shape_cast %3 : vector<1x16x256xf32> to vector<16x256xf32>
    %c0_6 = arith.constant 0 : index
    %c256 = arith.constant 256 : index
    %5 = vector.load %arg2[%c0_6, %c256] : memref<16x512xf32, #tpu.memory_space<vmem>>, vector<16x256xf32>
    tpu.vector_store %arg2[%c0_6, %c256], %4 {strides = array<i32>} : memref<16x512xf32, #tpu.memory_space<vmem>>, vector<16x256xf32>,
    return
  }
  func.func @transform_0(%arg0: i32) -> (i32, i32, i32) {
    %c1_i32 = arith.constant 1 : i32
    %c0_i32 = arith.constant 0 : i32
    %c0_i32_0 = arith.constant 0 : i32
    return %c1_i32, %arg0, %c0_i32 : i32, i32, i32
  }
  func.func @transform_1(%arg0: i32) -> (i32, i32) {
    %c0_i32 = arith.constant 0 : i32
    %c0_i32_0 = arith.constant 0 : i32
    return %arg0, %c0_i32 : i32, i32
  }
}

</mosaic_0001>

<llo_original>
// kernel: tpu_custom_call.1
$region0: #{tpu_custom_call.1}
  #allocation0 [shape = 'u32[]', space=smem, size = 0x4, offset = 0x4, fixed_abs, tag = 'smem constant byte address 0x4 - core index']
  #allocation1 [shape = 'u32[144,128]{1,0:T(1,128)}', space=vmem, size = 0x12000, scoped, tag = 'internal scratch']
  %s0 = inlined_call_operand.hbm [shape: f32[4,16,256], index: 0, kind: input, shape index: {}]
  %s1 = inlined_call_operand.hbm [shape: f32[16,512], index: 1, kind: output, shape index: {}]
  %s2 = sld [smem:[#allocation0]]
  $region18: #{tpu_custom_call.1} parent=0
    _
  %s4 = ssub.s32 1, %s2
  %s5 = scalar_select 0, %s4, %s2
  $region1: #{tpu_custom_call.1} parent=0
    #allocation2 [shape = 'u8[32768]{0}', space=vmem, size = 0x8000, scoped, tag = 'input window, operand 0, single buffered']
    #allocation3 [shape = 's32[1]{0}', space=sflag, size = 0x4, scoped, tag = 'scoped memory for tpu_custom_call.1']
    #allocation4 [shape = 's32[1]{0}', space=sflag, size = 0x4, scoped, tag = 'scoped memory for tpu_custom_call.1']
    #allocation5 [shape = 'u8[32768]{0}', space=vmem, size = 0x8000, scoped, tag = 'output window, operand 0, single buffered']
    %6 = vsyncpa [#allocation3], 0
    %7 = vsyncpa [#allocation4], 0
    // Predicated region
    $region2: #{tpu_custom_call.1} parent=1 // pred_check
      _
    $region3: #{tpu_custom_call.1} parent=1 // pred_check_branch
      %9 = sbr.rel (0) target = $region5
    $region4: #{tpu_custom_call.1} parent=1 // pred_region
      %s11 = ssub.s32 1024, 1024
      %12 = vsyncadd [#allocation3], %s11
      %s13 = scalar_lea.hbm %s0, 1024
      %s14 = sshll.u32 [#allocation2], 4
      %s15 = int_to_ptr.vmem [resolvable:$true] %s14
      %20 = dma.hbm_to_vmem [thread:$0]  %s13, 1024, %s15, [#allocation3], 256, 256, 16
    $region5: #{tpu_custom_call.1} parent=1 // pred_fallthru
      _
    // Predicated region
    $region6: #{tpu_custom_call.1} parent=1 // pred_check
      _
    $region7: #{tpu_custom_call.1} parent=1 // pred_check_branch
      %22 = sbr.rel (0) target = $region9
    $region8: #{tpu_custom_call.1} parent=1 // pred_region
      %23 = dma.done [#allocation3], 1024
    $region9: #{tpu_custom_call.1} parent=1 // pred_fallthru
      _
    %v24 = vld [vmem:[#allocation2] sm:$0xff]
    %v25 = vld [vmem:[#allocation2 + $0x8] sm:$0xff]
    %v26 = vld [vmem:[#allocation2 + $0x10] sm:$0xff]
    %v27 = vld [vmem:[#allocation2 + $0x18] sm:$0xff]
    %28 = vst [vmem:[#allocation5] sm:$0xff] %v24
    %29 = vst [vmem:[#allocation5 + $0x8] sm:$0xff] %v25
    %30 = vst [vmem:[#allocation5 + $0x20] sm:$0xff] %v26
    %31 = vst [vmem:[#allocation5 + $0x28] sm:$0xff] %v27
    %s32 = scalar_lea.vmem [#allocation2], 32
    %v33 = vld [vmem:[%s32] sm:$0xff]
    %v34 = vld [vmem:[%s32 + $0x8] sm:$0xff]
    %v35 = vld [vmem:[%s32 + $0x10] sm:$0xff]
    %v36 = vld [vmem:[%s32 + $0x18] sm:$0xff]
    %37 = vst [vmem:[#allocation5 + $0x10] sm:$0xff] %v33
    %38 = vst [vmem:[#allocation5 + $0x18] sm:$0xff] %v34
    %39 = vst [vmem:[#allocation5 + $0x30] sm:$0xff] %v35
    %40 = vst [vmem:[#allocation5 + $0x38] sm:$0xff] %v36
    // Predicated region
    $region10: #{tpu_custom_call.1} parent=1 // pred_check
      _
    $region11: #{tpu_custom_call.1} parent=1 // pred_check_branch
      %42 = sbr.rel (0) target = $region13
    $region12: #{tpu_custom_call.1} parent=1 // pred_region
      %s44 = ssub.s32 1024, 1024
      %45 = vsyncadd [#allocation4], %s44
      %s46 = sshll.u32 [#allocation5], 4
      %s47 = int_to_ptr.vmem [resolvable:$true] %s46
      %52 = dma.vmem_to_hbm [thread:$0]  %s47, 1024, %s1, [#allocation4], 512, 512, 32
    $region13: #{tpu_custom_call.1} parent=1 // pred_fallthru
      _
    // Predicated region
    $region14: #{tpu_custom_call.1} parent=1 // pred_check
      _
    $region15: #{tpu_custom_call.1} parent=1 // pred_check_branch
      %54 = sbr.rel (0) target = $region17
    $region16: #{tpu_custom_call.1} parent=1 // pred_region
      %55 = dma.done [#allocation4], 1024
    $region17: #{tpu_custom_call.1} parent=1 // pred_fallthru
      _
    %56 = vsyncpa [#allocation3], 1
    %57 = vsyncpa [#allocation4], 1

</llo_original>
